<compile_context>
chip_gen: v5e
topology: v5e:2x2
jax: 0.10.0
libtpu: 0.0.40
codegen_flags: <defaults>
</compile_context>

<pallas_src>
import jax
import jax.numpy as jnp
from jax import lax
from jax.experimental import pallas as pl
from jax.experimental.pallas import tpu as pltpu
import numpy as np


def _corelu_att_kernel(
    x_ref,                    # (NB, H, W*2C)   lane-packed concat(input, additional)
    wf_ref, bf_ref,           # fusion 1x1   : (W*2C, W*Cin), (1, W*Cin)
    wc_ref, bc_ref,           # 3x3 conv     : (3, W*Cin, W*Cout), (1, W*Cout)
    wp1_ref, bp1_ref,         # PA squeeze   : (W*Cout, W*Cr), (1, W*Cr)
    wp2_ref, bp2_ref,         # PA excite    : (W*Cr, W*Cout), (1, W*Cout)
    wc1_ref, bc1_ref,         # CA squeeze   : (W*Cout, Cr), (1, Cr)  (W-pool folded in)
    wc2_ref, bc2_ref,         # CA excite    : (Cr, W*Cout), (1, W*Cout)
    o_ref,                    # (NB, H, 2*W*Cout) packed [relu(ca) | min(ca, 0)]
):
    NB, H, W2C = x_ref.shape
    WCin = wf_ref.shape[1]
    WCout = bc_ref.shape[1]
    M = NB * H
    f32 = jnp.float32

    # ---- fusion 1x1 conv: block-diagonal matmul, stays lane packed ----
    x = x_ref[...].reshape(M, W2C)                               # leading-dim merge only
    fused = jnp.dot(x, wf_ref[...], preferred_element_type=f32) + bf_ref[...]
    fused3 = fused.reshape(NB, H, WCin)

    # ---- 3x3 conv: kw folded into block-tridiagonal weights, kh handled as
    #      two zero-padded row shifts -> 3 full-lane-width matmuls ----
    zrow = jnp.zeros((NB, 1, WCin), f32)
    up = jnp.concatenate([zrow, fused3[:, :H - 1, :]], axis=1)   # input row h-1
    dn = jnp.concatenate([fused3[:, 1:, :], zrow], axis=1)       # input row h+1

    conv = jnp.dot(up.reshape(M, WCin), wc_ref[0], preferred_element_type=f32)
    conv = conv + jnp.dot(fused, wc_ref[1], preferred_element_type=f32)
    conv = conv + jnp.dot(dn.reshape(M, WCin), wc_ref[2], preferred_element_type=f32)
    conv = conv + bc_ref[...]                                    # (M, W*Cout)

    # ---- PALayer: per-pixel gate, computed directly in packed layout ----
    p = jnp.maximum(
        jnp.dot(conv, wp1_ref[...], preferred_element_type=f32) + bp1_ref[...], 0.0)
    p = jnp.dot(p, wp2_ref[...], preferred_element_type=f32) + bp2_ref[...]
    pa = conv * jax.nn.sigmoid(p)                                # (M, W*Cout)

    # ---- CALayer: per-image global average pool (H in-kernel, W folded into
    #      wc1), squeeze/excite, per-channel gate ----
    pa3 = pa.reshape(NB, H, WCout)
    gap_h = jnp.mean(pa3, axis=1)                                # (NB, W*Cout)
    z = jnp.maximum(
        jnp.dot(gap_h, wc1_ref[...], preferred_element_type=f32) + bc1_ref[...], 0.0)
    y = jax.nn.sigmoid(
        jnp.dot(z, wc2_ref[...], preferred_element_type=f32) + bc2_ref[...])  # (NB, W*Cout)
    ca = pa3 * y[:, None, :]                                     # (NB, H, W*Cout)

    # ---- ReLU split, lane-dense packed output (two aligned 128-lane stores) ----
    o_ref[:, :, :WCout] = jnp.maximum(ca, 0.0).astype(o_ref.dtype)
    o_ref[:, :, WCout:] = jnp.minimum(ca, 0.0).astype(o_ref.dtype)


def _block_diag(sel, blk):
    """sel: (W, W) 0/1 selector over (input column, output column); blk: (a, b).
    Returns (W*a, W*b) with blk placed at every selected (wi, wo) block."""
    a, b = blk.shape
    W = sel.shape[0]
    return jnp.einsum("uv,cd->ucvd", sel, blk).reshape(W * a, W * b)


def pack_params(params, W):
    """Turn canonical per-channel weights into block-structured lane-packed
    matrices so every conv inside the kernel is a full-lane-width matmul."""
    wf = params["wf"]                       # (2C, Cin)
    wc = params["wc"]                       # (3, 3, Cin, Cout)  HWIO
    Cin = wf.shape[1]
    Cout = wc.shape[-1]
    Cr = params["wp1"].shape[1]
    eye = jnp.eye(W, dtype=jnp.float32)

    WF = _block_diag(eye, wf)                                   # (W*2C, W*Cin)
    bF = jnp.tile(params["bf"], (1, W))                         # (1, W*Cin)

    wc_rows = []
    for kh in range(3):
        m = jnp.zeros((W * Cin, W * Cout), jnp.float32)
        for kw in range(3):
            # input column wi = output column w + kw - 1  (zero at W edges)
            sel = jnp.eye(W, k=1 - kw, dtype=jnp.float32)
            m = m + _block_diag(sel, wc[kh, kw])
        wc_rows.append(m)
    WC = jnp.stack(wc_rows, axis=0)                             # (3, W*Cin, W*Cout)
    bC = jnp.tile(params["bc"], (1, W))                         # (1, W*Cout)

    WP1 = _block_diag(eye, params["wp1"])                       # (W*Cout, W*Cr)
    bP1 = jnp.tile(params["bp1"], (1, W))                       # (1, W*Cr)
    # PA excite emits the per-pixel scalar already broadcast to all Cout lanes.
    wp2b = jnp.broadcast_to(params["wp2"], (Cr, Cout))
    WP2 = _block_diag(eye, wp2b)                                # (W*Cr, W*Cout)
    bP2 = jnp.tile(params["bp2"], (1, W * Cout))                # (1, W*Cout)

    # CA squeeze: average over the W groups folded into the weight (1/W); the
    # H average is done in-kernel. Excite tiled back onto the packed lanes.
    WC1 = jnp.tile(params["wc1"], (W, 1)) / float(W)            # (W*Cout, Cr)
    bC1 = params["bc1"]                                         # (1, Cr)
    WC2 = jnp.tile(params["wc2"], (1, W))                       # (Cr, W*Cout)
    bC2 = jnp.tile(params["bc2"], (1, W))                       # (1, W*Cout)

    return [WF, bF, WC, bC, WP1, bP1, WP2, bP2, WC1, bC1, WC2, bC2]


def corelu_att_block(input_features, additional_features, params, *, images_per_block=1):
    """input_features, additional_features: (N, H, W, Cin) NHWC float32.
    Returns (relu(y), y - relu(y)) in NHWC, matching the PyTorch module."""
    x = jnp.concatenate([input_features, additional_features], axis=-1)
    N, H, W, C2 = x.shape
    Cin = params["wf"].shape[1]
    Cout = params["wc"].shape[-1]
    Cr = params["wp1"].shape[1]

    nb = images_per_block
    assert N % nb == 0, "batch must be divisible by images_per_block"
    x_packed = x.reshape(N, H, W * C2)                          # lane-dense input slab

    packed_w = pack_params(params, W)
    W2C, WCin, WCout, WCr = W * C2, W * Cin, W * Cout, W * Cr

    # TODO(synk): mark the constant-index weight specs pipeline_mode=pl.Buffered(1)
    # once channel sizes are production-scale (saves double-buffer VMEM on v7x).
    def const_spec(arr):
        zeros = (0,) * arr.ndim
        return pl.BlockSpec(arr.shape, lambda n, _z=zeros: _z)

    in_specs = [pl.BlockSpec((nb, H, W2C), lambda n: (n, 0, 0))]
    in_specs += [const_spec(p) for p in packed_w]
    out_spec = pl.BlockSpec((nb, H, 2 * WCout), lambda n: (n, 0, 0))

    # Advisory cost estimate for XLA's scheduler.
    mtot = N * H
    flops = (2 * mtot * W2C * WCin
             + 2 * 3 * mtot * WCin * WCout
             + 2 * mtot * (WCout * WCr + WCr * WCout)
             + 2 * N * (WCout * Cr + Cr * WCout))
    weight_bytes = 4 * sum(int(p.size) for p in packed_w)
    cost = pl.CostEstimate(
        flops=int(flops),
        transcendentals=int(mtot * WCout + N * WCout),
        bytes_accessed=int(4 * (N * H * W2C + N * H * 2 * WCout) + weight_bytes))

    out_packed = pl.pallas_call(
        _corelu_att_kernel,
        out_shape=jax.ShapeDtypeStruct((N, H, 2 * WCout), jnp.float32),
        grid_spec=pltpu.PrefetchScalarGridSpec(
            num_scalar_prefetch=0,
            grid=(N // nb,),
            in_specs=in_specs,
            out_specs=out_spec,
        ),
        compiler_params=pltpu.CompilerParams(
            dimension_semantics=("parallel",)),
        cost_estimate=cost,
    )(x_packed, *packed_w)

    out = out_packed.reshape(N, H, 2, W, Cout)
    return out[:, :, 0], out[:, :, 1]


def make_params(key, in_channels, out_channels, fusion_rate=2):
    """Deterministic synthetic weights in canonical (matmul-friendly) layout.
    Mapping from PyTorch: 1x1 Conv2d weight (O, I, 1, 1) -> (I, O); the 3x3
    Conv2d weight (O, I, 3, 3) -> HWIO (3, 3, I, O)."""
    cr = out_channels // 8
    assert cr >= 1, "out_channels must be >= 8 for the channel//8 squeeze"
    ks = jax.random.split(key, 12)

    def w(k, shape):
        return jax.random.normal(k, shape, jnp.float32) * 0.1

    return {
        "wf": w(ks[0], (in_channels * fusion_rate, in_channels)),
        "bf": w(ks[1], (1, in_channels)),
        "wc": w(ks[2], (3, 3, in_channels, out_channels)),      # HWIO
        "bc": w(ks[3], (1, out_channels)),
        "wp1": w(ks[4], (out_channels, cr)), "bp1": w(ks[5], (1, cr)),
        "wp2": w(ks[6], (cr, 1)),            "bp2": w(ks[7], (1, 1)),
        "wc1": w(ks[8], (out_channels, cr)), "bc1": w(ks[9], (1, cr)),
        "wc2": w(ks[10], (cr, out_channels)), "bc2": w(ks[11], (1, out_channels)),
    }


def reference(input_features, additional_features, params):
    """Pure-JAX reference mirroring the PyTorch forward (NHWC, norm=False)."""
    x = jnp.concatenate([input_features, additional_features], axis=-1)
    fused = jnp.einsum("nhwc,cd->nhwd", x, params["wf"]) + params["bf"][0]
    conv = lax.conv_general_dilated(
        fused, params["wc"], window_strides=(1, 1), padding="SAME",
        dimension_numbers=("NHWC", "HWIO", "NHWC")) + params["bc"][0]
    p = jax.nn.relu(jnp.einsum("nhwc,cd->nhwd", conv, params["wp1"]) + params["bp1"][0])
    p = jnp.einsum("nhwc,cd->nhwd", p, params["wp2"]) + params["bp2"][0]
    pa = conv * jax.nn.sigmoid(p)
    gap = pa.mean(axis=(1, 2), keepdims=True)
    c = jax.nn.relu(jnp.einsum("nhwc,cd->nhwd", gap, params["wc1"]) + params["bc1"][0])
    c = jnp.einsum("nhwc,cd->nhwd", c, params["wc2"]) + params["bc2"][0]
    ca = pa * jax.nn.sigmoid(c)
    o1 = jax.nn.relu(ca)
    return o1, ca - o1


if __name__ == "__main__":
    N, H, W = 2, 16, 16
    in_channels = 8
    out_channels = 8    # out_channels // 8 == 1 for the PA/CA squeeze convs

    key = jax.random.PRNGKey(0)
    k_in, k_add, k_par = jax.random.split(key, 3)
    input_features = jax.random.normal(k_in, (N, H, W, in_channels), jnp.float32)
    additional_features = jax.random.normal(k_add, (N, H, W, in_channels), jnp.float32)
    params = make_params(k_par, in_channels, out_channels)

    o1, o2 = corelu_att_block(input_features, additional_features, params)
    jax.block_until_ready((o1, o2))

    r1, r2 = reference(input_features, additional_features, params)
    np.testing.assert_allclose(np.asarray(o1), np.asarray(r1), rtol=1e-4, atol=1e-5)
    np.testing.assert_allclose(np.asarray(o2), np.asarray(r2), rtol=1e-4, atol=1e-5)

    print("KERNEL_OK")
</pallas_src>

<mosaic_0001>
module attributes {stable_mosaic.version = 11 : i64} {
  func.func @_corelu_att_kernel(%arg0: i32, %arg1: memref<1x16x256xf32, #tpu.memory_space<vmem>>, %arg2: memref<256x128xf32, #tpu.memory_space<vmem>>, %arg3: memref<1x128xf32, #tpu.memory_space<vmem>>, %arg4: memref<3x128x128xf32, #tpu.memory_space<vmem>>, %arg5: memref<1x128xf32, #tpu.memory_space<vmem>>, %arg6: memref<128x16xf32, #tpu.memory_space<vmem>>, %arg7: memref<1x16xf32, #tpu.memory_space<vmem>>, %arg8: memref<16x128xf32, #tpu.memory_space<vmem>>, %arg9: memref<1x128xf32, #tpu.memory_space<vmem>>, %arg10: memref<128x1xf32, #tpu.memory_space<vmem>>, %arg11: memref<1x1xf32, #tpu.memory_space<vmem>>, %arg12: memref<1x128xf32, #tpu.memory_space<vmem>>, %arg13: memref<1x128xf32, #tpu.memory_space<vmem>>, %arg14: memref<1x16x256xf32, #tpu.memory_space<vmem>>) attributes {dimension_semantics = [#tpu.dimension_semantics<parallel>], iteration_bounds = array<i64: 2>, scalar_prefetch = 0 : i64, scratch_operands = 0 : i64, tpu.core_type = #tpu.core_type<tc>, window_params = [{transform_indices = @transform_0, window_bounds = array<i64: 1, 16, 256>}, {pipeline_mode = #tpu.pipeline_mode<synchronous>, transform_indices = @transform_1, window_bounds = array<i64: 256, 128>}, {pipeline_mode = #tpu.pipeline_mode<synchronous>, transform_indices = @transform_2, window_bounds = array<i64: 1, 128>}, {pipeline_mode = #tpu.pipeline_mode<synchronous>, transform_indices = @transform_3, window_bounds = array<i64: 3, 128, 128>}, {pipeline_mode = #tpu.pipeline_mode<synchronous>, transform_indices = @transform_4, window_bounds = array<i64: 1, 128>}, {pipeline_mode = #tpu.pipeline_mode<synchronous>, transform_indices = @transform_5, window_bounds = array<i64: 128, 16>}, {pipeline_mode = #tpu.pipeline_mode<synchronous>, transform_indices = @transform_6, window_bounds = array<i64: 1, 16>}, {pipeline_mode = #tpu.pipeline_mode<synchronous>, transform_indices = @transform_7, window_bounds = array<i64: 16, 128>}, {pipeline_mode = #tpu.pipeline_mode<synchronous>, transform_indices = @transform_8, window_bounds = array<i64: 1, 128>}, {pipeline_mode = #tpu.pipeline_mode<synchronous>, transform_indices = @transform_9, window_bounds = array<i64: 128, 1>}, {pipeline_mode = #tpu.pipeline_mode<synchronous>, transform_indices = @transform_10, window_bounds = array<i64: 1, 1>}, {pipeline_mode = #tpu.pipeline_mode<synchronous>, transform_indices = @transform_11, window_bounds = array<i64: 1, 128>}, {pipeline_mode = #tpu.pipeline_mode<synchronous>, transform_indices = @transform_12, window_bounds = array<i64: 1, 128>}, {transform_indices = @transform_13, window_bounds = array<i64: 1, 16, 256>}]} {
    %c0 = arith.constant 0 : index
    %c0_0 = arith.constant 0 : index
    %c0_1 = arith.constant 0 : index
    %0 = vector.load %arg1[%c0, %c0_0, %c0_1] : memref<1x16x256xf32, #tpu.memory_space<vmem>>, vector<1x16x256xf32>
    %1 = vector.shape_cast %0 : vector<1x16x256xf32> to vector<16x256xf32>
    %c0_2 = arith.constant 0 : index
    %c0_3 = arith.constant 0 : index
    %2 = vector.load %arg2[%c0_2, %c0_3] : memref<256x128xf32, #tpu.memory_space<vmem>>, vector<256x128xf32>
    %cst = arith.constant dense<0.000000e+00> : vector<16x128xf32>
    %3 = tpu.matmul %1, %2, %cst {dimension_numbers = #tpu.dot_dimension_numbers<[1], [0], [0], [1], [0, 0, 1, 1], [], []>} : vector<16x256xf32>, vector<256x128xf32>, vector<16x128xf32> -> vector<16x128xf32>
    %c0_4 = arith.constant 0 : index
    %c0_5 = arith.constant 0 : index
    %4 = vector.load %arg3[%c0_4, %c0_5] : memref<1x128xf32, #tpu.memory_space<vmem>>, vector<1x128xf32>
    %5 = vector.broadcast %4 : vector<1x128xf32> to vector<16x128xf32>
    %6 = arith.addf %3, %5 : vector<16x128xf32>
    %7 = vector.shape_cast %6 : vector<16x128xf32> to vector<1x16x128xf32>
    %cst_6 = arith.constant 0.000000e+00 : f32
    %8 = vector.broadcast %cst_6 : f32 to vector<1x1x128xf32>
    %9 = vector.extract_strided_slice %7 {offsets = [0, 0, 0], sizes = [1, 15, 128], strides = [1, 1, 1]} : vector<1x16x128xf32> to vector<1x15x128xf32>
    %10 = tpu.concatenate %8, %9 in 1 : vector<1x1x128xf32>, vector<1x15x128xf32> -> vector<1x16x128xf32>
    %11 = vector.extract_strided_slice %7 {offsets = [0, 1, 0], sizes = [1, 15, 128], strides = [1, 1, 1]} : vector<1x16x128xf32> to vector<1x15x128xf32>
    %12 = tpu.concatenate %11, %8 in 1 : vector<1x15x128xf32>, vector<1x1x128xf32> -> vector<1x16x128xf32>
    %13 = vector.shape_cast %10 : vector<1x16x128xf32> to vector<16x128xf32>
    %c0_7 = arith.constant 0 : index
    %c0_8 = arith.constant 0 : index
    %c0_9 = arith.constant 0 : index
    %14 = vector.load %arg4[%c0_7, %c0_8, %c0_9] : memref<3x128x128xf32, #tpu.memory_space<vmem>>, vector<1x128x128xf32>
    %15 = vector.shape_cast %14 : vector<1x128x128xf32> to vector<128x128xf32>
    %cst_10 = arith.constant dense<0.000000e+00> : vector<16x128xf32>
    %16 = tpu.matmul %13, %15, %cst_10 {dimension_numbers = #tpu.dot_dimension_numbers<[1], [0], [0], [1], [0, 0, 1, 1], [], []>} : vector<16x128xf32>, vector<128x128xf32>, vector<16x128xf32> -> vector<16x128xf32>
    %c1 = arith.constant 1 : index
    %c0_11 = arith.constant 0 : index
    %c0_12 = arith.constant 0 : index
    %17 = vector.load %arg4[%c1, %c0_11, %c0_12] : memref<3x128x128xf32, #tpu.memory_space<vmem>>, vector<1x128x128xf32>
    %18 = vector.shape_cast %17 : vector<1x128x128xf32> to vector<128x128xf32>
    %cst_13 = arith.constant dense<0.000000e+00> : vector<16x128xf32>
    %19 = tpu.matmul %6, %18, %cst_13 {dimension_numbers = #tpu.dot_dimension_numbers<[1], [0], [0], [1], [0, 0, 1, 1], [], []>} : vector<16x128xf32>, vector<128x128xf32>, vector<16x128xf32> -> vector<16x128xf32>
    %20 = arith.addf %16, %19 : vector<16x128xf32>
    %21 = vector.shape_cast %12 : vector<1x16x128xf32> to vector<16x128xf32>
    %c2 = arith.constant 2 : index
    %c0_14 = arith.constant 0 : index
    %c0_15 = arith.constant 0 : index
    %22 = vector.load %arg4[%c2, %c0_14, %c0_15] : memref<3x128x128xf32, #tpu.memory_space<vmem>>, vector<1x128x128xf32>
    %23 = vector.shape_cast %22 : vector<1x128x128xf32> to vector<128x128xf32>
    %cst_16 = arith.constant dense<0.000000e+00> : vector<16x128xf32>
    %24 = tpu.matmul %21, %23, %cst_16 {dimension_numbers = #tpu.dot_dimension_numbers<[1], [0], [0], [1], [0, 0, 1, 1], [], []>} : vector<16x128xf32>, vector<128x128xf32>, vector<16x128xf32> -> vector<16x128xf32>
    %25 = arith.addf %20, %24 : vector<16x128xf32>
    %c0_17 = arith.constant 0 : index
    %c0_18 = arith.constant 0 : index
    %26 = vector.load %arg5[%c0_17, %c0_18] : memref<1x128xf32, #tpu.memory_space<vmem>>, vector<1x128xf32>
    %27 = vector.broadcast %26 : vector<1x128xf32> to vector<16x128xf32>
    %28 = arith.addf %25, %27 : vector<16x128xf32>
    %c0_19 = arith.constant 0 : index
    %c0_20 = arith.constant 0 : index
    %29 = vector.load %arg6[%c0_19, %c0_20] : memref<128x16xf32, #tpu.memory_space<vmem>>, vector<128x16xf32>
    %cst_21 = arith.constant dense<0.000000e+00> : vector<16x16xf32>
    %30 = tpu.matmul %28, %29, %cst_21 {dimension_numbers = #tpu.dot_dimension_numbers<[1], [0], [0], [1], [0, 0, 1, 1], [], []>} : vector<16x128xf32>, vector<128x16xf32>, vector<16x16xf32> -> vector<16x16xf32>
    %c0_22 = arith.constant 0 : index
    %c0_23 = arith.constant 0 : index
    %31 = vector.load %arg7[%c0_22, %c0_23] : memref<1x16xf32, #tpu.memory_space<vmem>>, vector<1x16xf32>
    %32 = vector.broadcast %31 : vector<1x16xf32> to vector<16x16xf32>
    %33 = arith.addf %30, %32 : vector<16x16xf32>
    %cst_24 = arith.constant 0.000000e+00 : f32
    %34 = vector.broadcast %cst_24 : f32 to vector<16x16xf32>
    %35 = arith.maximumf %33, %34 : vector<16x16xf32>
    %c0_25 = arith.constant 0 : index
    %c0_26 = arith.constant 0 : index
    %36 = vector.load %arg8[%c0_25, %c0_26] : memref<16x128xf32, #tpu.memory_space<vmem>>, vector<16x128xf32>
    %cst_27 = arith.constant dense<0.000000e+00> : vector<16x128xf32>
    %37 = tpu.matmul %35, %36, %cst_27 {dimension_numbers = #tpu.dot_dimension_numbers<[1], [0], [0], [1], [0, 0, 1, 1], [], []>} : vector<16x16xf32>, vector<16x128xf32>, vector<16x128xf32> -> vector<16x128xf32>
    %c0_28 = arith.constant 0 : index
    %c0_29 = arith.constant 0 : index
    %38 = vector.load %arg9[%c0_28, %c0_29] : memref<1x128xf32, #tpu.memory_space<vmem>>, vector<1x128xf32>
    %39 = vector.broadcast %38 : vector<1x128xf32> to vector<16x128xf32>
    %40 = arith.addf %37, %39 : vector<16x128xf32>
    %41 = arith.negf %40 : vector<16x128xf32>
    %42 = math.exp %41 : vector<16x128xf32>
    %cst_30 = arith.constant 1.000000e+00 : f32
    %43 = vector.broadcast %cst_30 : f32 to vector<16x128xf32>
    %44 = arith.addf %43, %42 : vector<16x128xf32>
    %45 = arith.divf %43, %44 : vector<16x128xf32>
    %46 = arith.mulf %28, %45 : vector<16x128xf32>
    %47 = vector.shape_cast %46 : vector<16x128xf32> to vector<1x16x128xf32>
    %cst_31 = arith.constant dense<0.000000e+00> : vector<1x128xf32>
    %48 = vector.multi_reduction <add>, %47, %cst_31 [1] : vector<1x16x128xf32> to vector<1x128xf32>
    %cst_32 = arith.constant 1.600000e+01 : f32
    %49 = vector.broadcast %cst_32 : f32 to vector<1x128xf32>
    %50 = arith.divf %48, %49 : vector<1x128xf32>
    %c0_33 = arith.constant 0 : index
    %c0_34 = arith.constant 0 : index
    %51 = vector.load %arg10[%c0_33, %c0_34] : memref<128x1xf32, #tpu.memory_space<vmem>>, vector<128x1xf32>
    %cst_35 = arith.constant dense<0.000000e+00> : vector<1x1xf32>
    %52 = tpu.matmul %50, %51, %cst_35 {dimension_numbers = #tpu.dot_dimension_numbers<[1], [0], [0], [1], [0, 0, 1, 1], [], []>} : vector<1x128xf32>, vector<128x1xf32>, vector<1x1xf32> -> vector<1x1xf32>
    %c0_36 = arith.constant 0 : index
    %c0_37 = arith.constant 0 : index
    %53 = vector.load %arg11[%c0_36, %c0_37] : memref<1x1xf32, #tpu.memory_space<vmem>>, vector<1x1xf32>
    %54 = arith.addf %52, %53 : vector<1x1xf32>
    %cst_38 = arith.constant 0.000000e+00 : f32
    %55 = vector.broadcast %cst_38 : f32 to vector<1x1xf32>
    %56 = arith.maximumf %54, %55 : vector<1x1xf32>
    %c0_39 = arith.constant 0 : index
    %c0_40 = arith.constant 0 : index
    %57 = vector.load %arg12[%c0_39, %c0_40] : memref<1x128xf32, #tpu.memory_space<vmem>>, vector<1x128xf32>
    %cst_41 = arith.constant dense<0.000000e+00> : vector<1x128xf32>
    %58 = tpu.matmul %56, %57, %cst_41 {dimension_numbers = #tpu.dot_dimension_numbers<[1], [0], [0], [1], [0, 0, 1, 1], [], []>} : vector<1x1xf32>, vector<1x128xf32>, vector<1x128xf32> -> vector<1x128xf32>
    %c0_42 = arith.constant 0 : index
    %c0_43 = arith.constant 0 : index
    %59 = vector.load %arg13[%c0_42, %c0_43] : memref<1x128xf32, #tpu.memory_space<vmem>>, vector<1x128xf32>
    %60 = arith.addf %58, %59 : vector<1x128xf32>
    %61 = arith.negf %60 : vector<1x128xf32>
    %62 = math.exp %61 : vector<1x128xf32>
    %cst_44 = arith.constant 1.000000e+00 : f32
    %63 = vector.broadcast %cst_44 : f32 to vector<1x128xf32>
    %64 = arith.addf %63, %62 : vector<1x128xf32>
    %65 = arith.divf %63, %64 : vector<1x128xf32>
    %66 = vector.shape_cast %65 : vector<1x128xf32> to vector<1x1x128xf32>
    %67 = vector.broadcast %66 : vector<1x1x128xf32> to vector<1x16x128xf32>
    %68 = arith.mulf %47, %67 : vector<1x16x128xf32>
    %cst_45 = arith.constant 0.000000e+00 : f32
    %69 = vector.broadcast %cst_45 : f32 to vector<1x16x128xf32>
    %70 = arith.maximumf %68, %69 : vector<1x16x128xf32>
    %c0_46 = arith.constant 0 : index
    %c0_47 = arith.constant 0 : index
    %c0_48 = arith.constant 0 : index
    %71 = vector.load %arg14[%c0_46, %c0_47, %c0_48] : memref<1x16x256xf32, #tpu.memory_space<vmem>>, vector<1x16x128xf32>
    tpu.vector_store %arg14[%c0_46, %c0_47, %c0_48], %70 {strides = array<i32>} : memref<1x16x256xf32, #tpu.memory_space<vmem>>, vector<1x16x128xf32>,
    %cst_49 = arith.constant 0.000000e+00 : f32
    %72 = vector.broadcast %cst_49 : f32 to vector<1x16x128xf32>
    %73 = arith.minimumf %68, %72 : vector<1x16x128xf32>
    %c0_50 = arith.constant 0 : index
    %c0_51 = arith.constant 0 : index
    %c128 = arith.constant 128 : index
    %74 = vector.load %arg14[%c0_50, %c0_51, %c128] : memref<1x16x256xf32, #tpu.memory_space<vmem>>, vector<1x16x128xf32>
    tpu.vector_store %arg14[%c0_50, %c0_51, %c128], %73 {strides = array<i32>} : memref<1x16x256xf32, #tpu.memory_space<vmem>>, vector<1x16x128xf32>,
    return
  }
  func.func @transform_0(%arg0: i32) -> (i32, i32, i32) {
    %c0_i32 = arith.constant 0 : i32
    %c0_i32_0 = arith.constant 0 : i32
    %c0_i32_1 = arith.constant 0 : i32
    return %arg0, %c0_i32, %c0_i32_0 : i32, i32, i32
  }
  func.func @transform_1(%arg0: i32) -> (i32, i32) {
    %c0_i32 = arith.constant 0 : i32
    %c0_i32_0 = arith.constant 0 : i32
    %c0_i32_1 = arith.constant 0 : i32
    return %c0_i32, %c0_i32_0 : i32, i32
  }
  func.func @transform_2(%arg0: i32) -> (i32, i32) {
    %c0_i32 = arith.constant 0 : i32
    %c0_i32_0 = arith.constant 0 : i32
    %c0_i32_1 = arith.constant 0 : i32
    return %c0_i32, %c0_i32_0 : i32, i32
  }
  func.func @transform_3(%arg0: i32) -> (i32, i32, i32) {
    %c0_i32 = arith.constant 0 : i32
    %c0_i32_0 = arith.constant 0 : i32
    %c0_i32_1 = arith.constant 0 : i32
    %c0_i32_2 = arith.constant 0 : i32
    return %c0_i32, %c0_i32_0, %c0_i32_1 : i32, i32, i32
  }
  func.func @transform_4(%arg0: i32) -> (i32, i32) {
    %c0_i32 = arith.constant 0 : i32
    %c0_i32_0 = arith.constant 0 : i32
    %c0_i32_1 = arith.constant 0 : i32
    return %c0_i32, %c0_i32_0 : i32, i32
  }
  func.func @transform_5(%arg0: i32) -> (i32, i32) {
    %c0_i32 = arith.constant 0 : i32
    %c0_i32_0 = arith.constant 0 : i32
    %c0_i32_1 = arith.constant 0 : i32
    return %c0_i32, %c0_i32_0 : i32, i32
  }
  func.func @transform_6(%arg0: i32) -> (i32, i32) {
    %c0_i32 = arith.constant 0 : i32
    %c0_i32_0 = arith.constant 0 : i32
    %c0_i32_1 = arith.constant 0 : i32
    return %c0_i32, %c0_i32_0 : i32, i32
  }
  func.func @transform_7(%arg0: i32) -> (i32, i32) {
    %c0_i32 = arith.constant 0 : i32
    %c0_i32_0 = arith.constant 0 : i32
    %c0_i32_1 = arith.constant 0 : i32
    return %c0_i32, %c0_i32_0 : i32, i32
  }
  func.func @transform_8(%arg0: i32) -> (i32, i32) {
    %c0_i32 = arith.constant 0 : i32
    %c0_i32_0 = arith.constant 0 : i32
    %c0_i32_1 = arith.constant 0 : i32
    return %c0_i32, %c0_i32_0 : i32, i32
  }
  func.func @transform_9(%arg0: i32) -> (i32, i32) {
    %c0_i32 = arith.constant 0 : i32
    %c0_i32_0 = arith.constant 0 : i32
    %c0_i32_1 = arith.constant 0 : i32
    return %c0_i32, %c0_i32_0 : i32, i32
  }
  func.func @transform_10(%arg0: i32) -> (i32, i32) {
    %c0_i32 = arith.constant 0 : i32
    %c0_i32_0 = arith.constant 0 : i32
    %c0_i32_1 = arith.constant 0 : i32
    return %c0_i32, %c0_i32_0 : i32, i32
  }
  func.func @transform_11(%arg0: i32) -> (i32, i32) {
    %c0_i32 = arith.constant 0 : i32
    %c0_i32_0 = arith.constant 0 : i32
    %c0_i32_1 = arith.constant 0 : i32
    return %c0_i32, %c0_i32_0 : i32, i32
  }
  func.func @transform_12(%arg0: i32) -> (i32, i32) {
    %c0_i32 = arith.constant 0 : i32
    %c0_i32_0 = arith.constant 0 : i32
    %c0_i32_1 = arith.constant 0 : i32
    return %c0_i32, %c0_i32_0 : i32, i32
  }
  func.func @transform_13(%arg0: i32) -> (i32, i32, i32) {
    %c0_i32 = arith.constant 0 : i32
    %c0_i32_0 = arith.constant 0 : i32
    %c0_i32_1 = arith.constant 0 : i32
    return %arg0, %c0_i32, %c0_i32_0 : i32, i32, i32
  }
}

</mosaic_0001>

<llo_original>
// kernel: tpu_custom_call.1
$region0: #{tpu_custom_call.1}
  #allocation0 [shape = 'u32[]', space=smem, size = 0x4, offset = 0x4, fixed_abs, tag = 'smem constant byte address 0x4 - core index']
  #allocation1 [shape = 'u32[72,128]{1,0:T(1,128)}', space=vmem, size = 0x9000, scoped, tag = 'internal scratch']
  #allocation2 [shape = 'f32[1,1]{1,0:T(1,128)S(1)}', space=vmem, size = 0x200, scoped, tag = 'scoped memory for tpu_custom_call.1']
  %s0 = inlined_call_operand.hbm [shape: f32[2,16,256], index: 0, kind: input, shape index: {}]
  %s1 = inlined_call_operand.vmem [shape: f32[256,128], index: 1, kind: input, shape index: {}]
  %s2 = inlined_call_operand.vmem [shape: f32[1,128], index: 2, kind: input, shape index: {}]
  %s3 = inlined_call_operand.hbm [shape: f32[3,128,128], index: 3, kind: input, shape index: {}]
  %s4 = inlined_call_operand.vmem [shape: f32[1,128], index: 4, kind: input, shape index: {}]
  %s5 = inlined_call_operand.vmem [shape: f32[128,16], index: 5, kind: input, shape index: {}]
  %s6 = inlined_call_operand.vmem [shape: f32[1,16], index: 6, kind: input, shape index: {}]
  %s7 = inlined_call_operand.vmem [shape: f32[16,128], index: 7, kind: input, shape index: {}]
  %s8 = inlined_call_operand.vmem [shape: f32[1,128], index: 8, kind: input, shape index: {}]
  %s9 = inlined_call_operand.vmem [shape: f32[128,1], index: 9, kind: input, shape index: {}]
  %s10 = inlined_call_operand.<no memory space> [shape: f32[1,1], index: 10, kind: input, shape index: {}]
  %s11 = inlined_call_operand.vmem [shape: f32[1,128], index: 11, kind: input, shape index: {}]
  %s12 = inlined_call_operand.vmem [shape: f32[1,128], index: 12, kind: input, shape index: {}]
  %s13 = inlined_call_operand.hbm [shape: f32[2,16,256], index: 13, kind: output, shape index: {}]
  %s14 = sld [smem:[#allocation0]]
  $region93: #{tpu_custom_call.1} parent=0
    _
  %s16 = ssub.s32 1, %s14
  %s17 = scalar_select 0, %s16, %s14
  %v18 = vstv %s10
  %19 = vst [vmem:[#allocation2] sm:$0x1] %v18
  $region1: #{tpu_custom_call.1} parent=0
    #allocation3 [shape = 'u8[32768]{0}', space=vmem, size = 0x8000, scoped, tag = 'input window, operand 0']
    #allocation4 [shape = 's32[2]{0}', space=sflag, size = 0x8, scoped, tag = 'scoped memory for tpu_custom_call.1']
    #allocation5 [shape = 's32[2]{0}', space=sflag, size = 0x8, scoped, tag = 'scoped memory for tpu_custom_call.1']
    #allocation6 [shape = 'u8[196608]{0}', space=vmem, size = 0x30000, scoped, tag = 'input window, operand 3, single buffered']
    #allocation7 [shape = 's32[1]{0}', space=sflag, size = 0x4, scoped, tag = 'scoped memory for tpu_custom_call.1']
    #allocation8 [shape = 'u8[32768]{0}', space=vmem, size = 0x8000, scoped, tag = 'output window, operand 0']
    %20 = vsyncpa [#allocation4], 0
    %s21 = scalar_lea.sflag [#allocation4], 1
    %22 = vsyncpa %s21, 0
    %23 = vsyncpa [#allocation7], 0
    %24 = vsyncpa [#allocation5], 0
    %s25 = scalar_lea.sflag [#allocation5], 1
    %26 = vsyncpa %s25, 0
    loop: start=0, step=1, limit=4
    $region2: #{tpu_custom_call.1} parent=1 // loop_pre_header
      _
    $region3: #{tpu_custom_call.1} parent=1 // loop_header
      %s28 = sphi 0, %s32
      %p29 = scmp.ge.s32.totalorder %s28, 4
      %s38 = sphi 0, %s40
      %s41 = sphi 0, %s38
      %s42 = sphi 0, %s41
      %s58 = sphi 0, %s42
      %s62 = sphi 0, %s62
      %s64 = sphi 0, %s62
      %s65 = sphi 0, %s64
      %s79 = sphi 0, %s65
      %s83 = sphi 0, %s83
      %s85 = sphi 0, %s83
      %s86 = sphi 0, %s85
      %s100 = sphi 0, %s86
      %s104 = sphi 0, %s104
      %s106 = sphi 0, %s104
      %s107 = sphi 0, %s106
      %s121 = sphi 0, %s107
      %s125 = sphi 0, %s125
      %s127 = sphi 0, %s125
      %s128 = sphi 0, %s127
      %s142 = sphi 0, %s128
      %s146 = sphi 0, %s146
      %s148 = sphi 0, %s146
      %s149 = sphi 0, %s148
      %s163 = sphi 0, %s149
      %s167 = sphi 0, %s167
      %s169 = sphi 0, %s167
      %s170 = sphi 0, %s169
      %s184 = sphi 0, %s170
      %s188 = sphi 0, %s188
      %s190 = sphi 0, %s188
      %s191 = sphi 0, %s190
      %s205 = sphi 0, %s191
      %s209 = sphi 0, %s209
      %s211 = sphi 0, %s209
      %s212 = sphi 0, %s211
      %s226 = sphi 0, %s212
      %s230 = sphi 0, %s230
      %s232 = sphi 0, %s230
      %s233 = sphi 0, %s232
      %s247 = sphi 0, %s233
      %s251 = sphi 0, %s251
      %s253 = sphi 0, %s251
      %s254 = sphi 0, %s253
      %s268 = sphi 0, %s254
      %s272 = sphi 0, %s272
      %s274 = sphi 0, %s272
      %s275 = sphi 0, %s274
      %s289 = sphi 0, %s275
      %s293 = sphi 0, %s293
      %s295 = sphi 0, %s293
      %s296 = sphi 0, %s295
      %s310 = sphi 0, %s296
      %s316 = sphi 0, %s318
      %s319 = sphi 0, %s316
      %s320 = sphi 0, %s319
      %s336 = sphi 0, %s320
    $region4: #{tpu_custom_call.1} parent=1 // loop_header_branch
      %31 = sbr.rel (%p29) target = $region8
    $region5: #{tpu_custom_call.1} parent=1 // loop_body
      %s33 = ssub.s32 %s28, 1
      %s34 = ssub.s32 %s28, 2
      %s35 = sadd.s32 %s28, 1
      %s36 = ssub.s32 %s28, %s35
      %p37 = scmp.eq.s32.totalorder %s36, 0
      %s39 = sadd.s32 %s38, 1
      %s40 = scalar_select %p37, %s38, %s39
      %p43 = pneg %p37
      %p44 = scmp.eq.s32.totalorder %s28, 1
      %p45 = por %p43, %p44
      %p46 = scmp.ne.s32.totalorder %s38, %s41
      %p47 = scmp.eq.s32.totalorder %s28, 0
      %p48 = por %p46, %p47
      %p49 = scmp.ne.s32.totalorder %s38, %s41
      %p50 = scmp.eq.s32.totalorder %s33, 1
      %p51 = por %p49, %p50
      %p52 = scmp.ne.s32.totalorder %s41, %s42
      %p53 = scmp.eq.s32.totalorder %s33, 0
      %p54 = por %p52, %p53
      %p55 = scmp.ne.s32.totalorder %s41, %s42
      %p56 = scmp.eq.s32.totalorder %s34, 1
      %p57 = por %p55, %p56
      %p59 = scmp.ne.s32.totalorder %s42, %s58
      %p60 = scmp.eq.s32.totalorder %s34, 0
      %p61 = por %p59, %p60
      %s63 = sadd.s32 %s62, 1
      %p66 = scmp.eq.s32.totalorder %s28, 1
      %p67 = scmp.ne.s32.totalorder %s62, %s64
      %p68 = scmp.eq.s32.totalorder %s28, 0
      %p69 = por %p67, %p68
      %p70 = scmp.ne.s32.totalorder %s62, %s64
      %p71 = scmp.eq.s32.totalorder %s33, 1
      %p72 = por %p70, %p71
      %p73 = scmp.ne.s32.totalorder %s64, %s65
      %p74 = scmp.eq.s32.totalorder %s33, 0
      %p75 = por %p73, %p74
      %p76 = scmp.ne.s32.totalorder %s64, %s65
      %p77 = scmp.eq.s32.totalorder %s34, 1
      %p78 = por %p76, %p77
      %p80 = scmp.ne.s32.totalorder %s65, %s79
      %p81 = scmp.eq.s32.totalorder %s34, 0
      %p82 = por %p80, %p81
      %s84 = sadd.s32 %s83, 1
      %p87 = scmp.eq.s32.totalorder %s28, 1
      %p88 = scmp.ne.s32.totalorder %s83, %s85
      %p89 = scmp.eq.s32.totalorder %s28, 0
      %p90 = por %p88, %p89
      %p91 = scmp.ne.s32.totalorder %s83, %s85
      %p92 = scmp.eq.s32.totalorder %s33, 1
      %p93 = por %p91, %p92
      %p94 = scmp.ne.s32.totalorder %s85, %s86
      %p95 = scmp.eq.s32.totalorder %s33, 0
      %p96 = por %p94, %p95
      %p97 = scmp.ne.s32.totalorder %s85, %s86
      %p98 = scmp.eq.s32.totalorder %s34, 1
      %p99 = por %p97, %p98
      %p101 = scmp.ne.s32.totalorder %s86, %s100
      %p102 = scmp.eq.s32.totalorder %s34, 0
      %p103 = por %p101, %p102
      %s105 = sadd.s32 %s104, 1
      %p108 = scmp.eq.s32.totalorder %s28, 1
      %p109 = scmp.ne.s32.totalorder %s104, %s106
      %p110 = scmp.eq.s32.totalorder %s28, 0
      %p111 = por %p109, %p110
      %p112 = scmp.ne.s32.totalorder %s104, %s106
      %p113 = scmp.eq.s32.totalorder %s33, 1
      %p114 = por %p112, %p113
      %p115 = scmp.ne.s32.totalorder %s106, %s107
      %p116 = scmp.eq.s32.totalorder %s33, 0
      %p117 = por %p115, %p116
      %p118 = scmp.ne.s32.totalorder %s106, %s107
      %p119 = scmp.eq.s32.totalorder %s34, 1
      %p120 = por %p118, %p119
      %p122 = scmp.ne.s32.totalorder %s107, %s121
      %p123 = scmp.eq.s32.totalorder %s34, 0
      %p124 = por %p122, %p123
      %s126 = sadd.s32 %s125, 1
      %p129 = scmp.eq.s32.totalorder %s28, 1
      %p130 = scmp.ne.s32.totalorder %s125, %s127
      %p131 = scmp.eq.s32.totalorder %s28, 0
      %p132 = por %p130, %p131
      %p133 = scmp.ne.s32.totalorder %s125, %s127
      %p134 = scmp.eq.s32.totalorder %s33, 1
      %p135 = por %p133, %p134
      %p136 = scmp.ne.s32.totalorder %s127, %s128
      %p137 = scmp.eq.s32.totalorder %s33, 0
      %p138 = por %p136, %p137
      %p139 = scmp.ne.s32.totalorder %s127, %s128
      %p140 = scmp.eq.s32.totalorder %s34, 1
      %p141 = por %p139, %p140
      %p143 = scmp.ne.s32.totalorder %s128, %s142
      %p144 = scmp.eq.s32.totalorder %s34, 0
      %p145 = por %p143, %p144
      %s147 = sadd.s32 %s146, 1
      %p150 = scmp.eq.s32.totalorder %s28, 1
      %p151 = scmp.ne.s32.totalorder %s146, %s148
      %p152 = scmp.eq.s32.totalorder %s28, 0
      %p153 = por %p151, %p152
      %p154 = scmp.ne.s32.totalorder %s146, %s148
      %p155 = scmp.eq.s32.totalorder %s33, 1
      %p156 = por %p154, %p155
      %p157 = scmp.ne.s32.totalorder %s148, %s149
      %p158 = scmp.eq.s32.totalorder %s33, 0
      %p159 = por %p157, %p158
      %p160 = scmp.ne.s32.totalorder %s148, %s149
      %p161 = scmp.eq.s32.totalorder %s34, 1
      %p162 = por %p160, %p161
      %p164 = scmp.ne.s32.totalorder %s149, %s163
      %p165 = scmp.eq.s32.totalorder %s34, 0
      %p166 = por %p164, %p165
      %s168 = sadd.s32 %s167, 1
      %p171 = scmp.eq.s32.totalorder %s28, 1
      %p172 = scmp.ne.s32.totalorder %s167, %s169
      %p173 = scmp.eq.s32.totalorder %s28, 0
      %p174 = por %p172, %p173
      %p175 = scmp.ne.s32.totalorder %s167, %s169
      %p176 = scmp.eq.s32.totalorder %s33, 1
      %p177 = por %p175, %p176
      %p178 = scmp.ne.s32.totalorder %s169, %s170
      %p179 = scmp.eq.s32.totalorder %s33, 0
      %p180 = por %p178, %p179
      %p181 = scmp.ne.s32.totalorder %s169, %s170
      %p182 = scmp.eq.s32.totalorder %s34, 1
      %p183 = por %p181, %p182
      %p185 = scmp.ne.s32.totalorder %s170, %s184
      %p186 = scmp.eq.s32.totalorder %s34, 0
      %p187 = por %p185, %p186
      %s189 = sadd.s32 %s188, 1
      %p192 = scmp.eq.s32.totalorder %s28, 1
      %p193 = scmp.ne.s32.totalorder %s188, %s190
      %p194 = scmp.eq.s32.totalorder %s28, 0
      %p195 = por %p193, %p194
      %p196 = scmp.ne.s32.totalorder %s188, %s190
      %p197 = scmp.eq.s32.totalorder %s33, 1
      %p198 = por %p196, %p197
      %p199 = scmp.ne.s32.totalorder %s190, %s191
      %p200 = scmp.eq.s32.totalorder %s33, 0
      %p201 = por %p199, %p200
      %p202 = scmp.ne.s32.totalorder %s190, %s191
      %p203 = scmp.eq.s32.totalorder %s34, 1
      %p204 = por %p202, %p203
      %p206 = scmp.ne.s32.totalorder %s191, %s205
      %p207 = scmp.eq.s32.totalorder %s34, 0
      %p208 = por %p206, %p207
      %s210 = sadd.s32 %s209, 1
      %p213 = scmp.eq.s32.totalorder %s28, 1
      %p214 = scmp.ne.s32.totalorder %s209, %s211
      %p215 = scmp.eq.s32.totalorder %s28, 0
      %p216 = por %p214, %p215
      %p217 = scmp.ne.s32.totalorder %s209, %s211
      %p218 = scmp.eq.s32.totalorder %s33, 1
      %p219 = por %p217, %p218
      %p220 = scmp.ne.s32.totalorder %s211, %s212
      %p221 = scmp.eq.s32.totalorder %s33, 0
      %p222 = por %p220, %p221
      %p223 = scmp.ne.s32.totalorder %s211, %s212
      %p224 = scmp.eq.s32.totalorder %s34, 1
      %p225 = por %p223, %p224
      %p227 = scmp.ne.s32.totalorder %s212, %s226
      %p228 = scmp.eq.s32.totalorder %s34, 0
      %p229 = por %p227, %p228
      %s231 = sadd.s32 %s230, 1
      %p234 = scmp.eq.s32.totalorder %s28, 1
      %p235 = scmp.ne.s32.totalorder %s230, %s232
      %p236 = scmp.eq.s32.totalorder %s28, 0
      %p237 = por %p235, %p236
      %p238 = scmp.ne.s32.totalorder %s230, %s232
      %p239 = scmp.eq.s32.totalorder %s33, 1
      %p240 = por %p238, %p239
      %p241 = scmp.ne.s32.totalorder %s232, %s233
      %p242 = scmp.eq.s32.totalorder %s33, 0
      %p243 = por %p241, %p242
      %p244 = scmp.ne.s32.totalorder %s232, %s233
      %p245 = scmp.eq.s32.totalorder %s34, 1
      %p246 = por %p244, %p245
      %p248 = scmp.ne.s32.totalorder %s233, %s247
      %p249 = scmp.eq.s32.totalorder %s34, 0
      %p250 = por %p248, %p249
      %s252 = sadd.s32 %s251, 1
      %p255 = scmp.eq.s32.totalorder %s28, 1
      %p256 = scmp.ne.s32.totalorder %s251, %s253
      %p257 = scmp.eq.s32.totalorder %s28, 0
      %p258 = por %p256, %p257
      %p259 = scmp.ne.s32.totalorder %s251, %s253
      %p260 = scmp.eq.s32.totalorder %s33, 1
      %p261 = por %p259, %p260
      %p262 = scmp.ne.s32.totalorder %s253, %s254
      %p263 = scmp.eq.s32.totalorder %s33, 0
      %p264 = por %p262, %p263
      %p265 = scmp.ne.s32.totalorder %s253, %s254
      %p266 = scmp.eq.s32.totalorder %s34, 1
      %p267 = por %p265, %p266
      %p269 = scmp.ne.s32.totalorder %s254, %s268
      %p270 = scmp.eq.s32.totalorder %s34, 0
      %p271 = por %p269, %p270
      %s273 = sadd.s32 %s272, 1
      %p276 = scmp.eq.s32.totalorder %s28, 1
      %p277 = scmp.ne.s32.totalorder %s272, %s274
      %p278 = scmp.eq.s32.totalorder %s28, 0
      %p279 = por %p277, %p278
      %p280 = scmp.ne.s32.totalorder %s272, %s274
      %p281 = scmp.eq.s32.totalorder %s33, 1
      %p282 = por %p280, %p281
      %p283 = scmp.ne.s32.totalorder %s274, %s275
      %p284 = scmp.eq.s32.totalorder %s33, 0
      %p285 = por %p283, %p284
      %p286 = scmp.ne.s32.totalorder %s274, %s275
      %p287 = scmp.eq.s32.totalorder %s34, 1
      %p288 = por %p286, %p287
      %p290 = scmp.ne.s32.totalorder %s275, %s289
      %p291 = scmp.eq.s32.totalorder %s34, 0
      %p292 = por %p290, %p291
      %s294 = sadd.s32 %s293, 1
      %p297 = scmp.eq.s32.totalorder %s28, 1
      %p298 = scmp.ne.s32.totalorder %s293, %s295
      %p299 = scmp.eq.s32.totalorder %s28, 0
      %p300 = por %p298, %p299
      %p301 = scmp.ne.s32.totalorder %s293, %s295
      %p302 = scmp.eq.s32.totalorder %s33, 1
      %p303 = por %p301, %p302
      %p304 = scmp.ne.s32.totalorder %s295, %s296
      %p305 = scmp.eq.s32.totalorder %s33, 0
      %p306 = por %p304, %p305
      %p307 = scmp.ne.s32.totalorder %s295, %s296
      %p308 = scmp.eq.s32.totalorder %s34, 1
      %p309 = por %p307, %p308
      %p311 = scmp.ne.s32.totalorder %s296, %s310
      %p312 = scmp.eq.s32.totalorder %s34, 0
      %p313 = por %p311, %p312
      %s314 = ssub.s32 %s28, %s35
      %p315 = scmp.eq.s32.totalorder %s314, 0
      %s317 = sadd.s32 %s316, 1
      %s318 = scalar_select %p315, %s316, %s317
      %p321 = pneg %p315
      %p322 = scmp.eq.s32.totalorder %s28, 1
      %p323 = por %p321, %p322
      %p324 = scmp.ne.s32.totalorder %s316, %s319
      %p325 = scmp.eq.s32.totalorder %s28, 0
      %p326 = por %p324, %p325
      %p327 = scmp.ne.s32.totalorder %s316, %s319
      %p328 = scmp.eq.s32.totalorder %s33, 1
      %p329 = por %p327, %p328
      %p330 = scmp.ne.s32.totalorder %s319, %s320
      %p331 = scmp.eq.s32.totalorder %s33, 0
      %p332 = por %p330, %p331
      %p333 = scmp.ne.s32.totalorder %s319, %s320
      %p334 = scmp.eq.s32.totalorder %s34, 1
      %p335 = por %p333, %p334
      %p337 = scmp.ne.s32.totalorder %s320, %s336
      %p338 = scmp.eq.s32.totalorder %s34, 0
      %p339 = por %p337, %p338
      %p340 = scmp.le.s32.totalorder 1, %s28
      %p341 = scmp.lt.s32.totalorder %s28, 3
      %p342 = pnand %p340, %p341
      %p343 = pneg %p342
      // Predicated region
      $region9: #{tpu_custom_call.1} parent=5 // pred_check
        _
      $region10: #{tpu_custom_call.1} parent=5 // pred_check_branch
        %345 = sbr.rel (%p342) target = $region12
      $region11: #{tpu_custom_call.1} parent=5 // pred_region
        %s346 = ssub.s32 %s28, 1
        // Predicated region
        $region13: #{tpu_custom_call.1} parent=11 // pred_check
          %p347 = pneg %p75
        $region14: #{tpu_custom_call.1} parent=11 // pred_check_branch
          %349 = sbr.rel (%p347) target = $region16
        $region15: #{tpu_custom_call.1} parent=11 // pred_region
          _
        $region16: #{tpu_custom_call.1} parent=11 // pred_fallthru
          _
        // Predicated region
        $region17: #{tpu_custom_call.1} parent=11 // pred_check
          %p350 = pneg %p96
        $region18: #{tpu_custom_call.1} parent=11 // pred_check_branch
          %352 = sbr.rel (%p350) target = $region20
        $region19: #{tpu_custom_call.1} parent=11 // pred_region
          _
        $region20: #{tpu_custom_call.1} parent=11 // pred_fallthru
          _
        // Predicated region
        $region21: #{tpu_custom_call.1} parent=11 // pred_check
          %p353 = pneg %p117
        $region22: #{tpu_custom_call.1} parent=11 // pred_check_branch
          %355 = sbr.rel (%p353) target = $region24
        $region23: #{tpu_custom_call.1} parent=11 // pred_region
          %357 = vsyncadd [#allocation7], 0
          %s358 = sshll.u32 %s3, 4
          %s359 = int_to_ptr.hbm [resolvable:$true] %s358
          %s360 = sshll.u32 [#allocation6], 4
          %s361 = int_to_ptr.vmem [resolvable:$true] %s360
          %366 = dma.hbm_to_vmem [thread:$0]  %s359, 6144, %s361, [#allocation7], 128, 128, 8
        $region24: #{tpu_custom_call.1} parent=11 // pred_fallthru
          _
        // Predicated region
        $region25: #{tpu_custom_call.1} parent=11 // pred_check
          %p367 = pneg %p138
        $region26: #{tpu_custom_call.1} parent=11 // pred_check_branch
          %369 = sbr.rel (%p367) target = $region28
        $region27: #{tpu_custom_call.1} parent=11 // pred_region
          _
        $region28: #{tpu_custom_call.1} parent=11 // pred_fallthru
          _
        // Predicated region
        $region29: #{tpu_custom_call.1} parent=11 // pred_check
          %p370 = pneg %p159
        $region30: #{tpu_custom_call.1} parent=11 // pred_check_branch
          %372 = sbr.rel (%p370) target = $region32
        $region31: #{tpu_custom_call.1} parent=11 // pred_region
          _
        $region32: #{tpu_custom_call.1} parent=11 // pred_fallthru
          _
        // Predicated region
        $region33: #{tpu_custom_call.1} parent=11 // pred_check
          %p373 = pneg %p180
        $region34: #{tpu_custom_call.1} parent=11 // pred_check_branch
          %375 = sbr.rel (%p373) target = $region36
        $region35: #{tpu_custom_call.1} parent=11 // pred_region
          _
        $region36: #{tpu_custom_call.1} parent=11 // pred_fallthru
          _
        // Predicated region
        $region37: #{tpu_custom_call.1} parent=11 // pred_check
          %p376 = pneg %p201
        $region38: #{tpu_custom_call.1} parent=11 // pred_check_branch
          %378 = sbr.rel (%p376) target = $region40
        $region39: #{tpu_custom_call.1} parent=11 // pred_region
          _
        $region40: #{tpu_custom_call.1} parent=11 // pred_fallthru
          _
        // Predicated region
        $region41: #{tpu_custom_call.1} parent=11 // pred_check
          %p379 = pneg %p222
        $region42: #{tpu_custom_call.1} parent=11 // pred_check_branch
          %381 = sbr.rel (%p379) target = $region44
        $region43: #{tpu_custom_call.1} parent=11 // pred_region
          _
        $region44: #{tpu_custom_call.1} parent=11 // pred_fallthru
          _
        // Predicated region
        $region45: #{tpu_custom_call.1} parent=11 // pred_check
          %p382 = pneg %p243
        $region46: #{tpu_custom_call.1} parent=11 // pred_check_branch
          %384 = sbr.rel (%p382) target = $region48
        $region47: #{tpu_custom_call.1} parent=11 // pred_region
          _
        $region48: #{tpu_custom_call.1} parent=11 // pred_fallthru
          _
        // Predicated region
        $region49: #{tpu_custom_call.1} parent=11 // pred_check
          %p385 = pneg %p264
        $region50: #{tpu_custom_call.1} parent=11 // pred_check_branch
          %387 = sbr.rel (%p385) target = $region52
        $region51: #{tpu_custom_call.1} parent=11 // pred_region
          _
        $region52: #{tpu_custom_call.1} parent=11 // pred_fallthru
          _
        // Predicated region
        $region53: #{tpu_custom_call.1} parent=11 // pred_check
          %p388 = pneg %p285
        $region54: #{tpu_custom_call.1} parent=11 // pred_check_branch
          %390 = sbr.rel (%p388) target = $region56
        $region55: #{tpu_custom_call.1} parent=11 // pred_region
          _
        $region56: #{tpu_custom_call.1} parent=11 // pred_fallthru
          _
        // Predicated region
        $region57: #{tpu_custom_call.1} parent=11 // pred_check
          %p391 = pneg %p306
        $region58: #{tpu_custom_call.1} parent=11 // pred_check_branch
          %393 = sbr.rel (%p391) target = $region60
        $region59: #{tpu_custom_call.1} parent=11 // pred_region
          _
        $region60: #{tpu_custom_call.1} parent=11 // pred_fallthru
          _
      $region12: #{tpu_custom_call.1} parent=5 // pred_fallthru
        _
      %p394 = scmp.lt.s32.totalorder %s28, 2
      // Predicated region
      $region61: #{tpu_custom_call.1} parent=5 // pred_check
        %p395 = pneg %p394
      $region62: #{tpu_custom_call.1} parent=5 // pred_check_branch
        %397 = sbr.rel (%p395) target = $region64
      $region63: #{tpu_custom_call.1} parent=5 // pred_region
        // Predicated region
        $region65: #{tpu_custom_call.1} parent=63 // pred_check
          %p398 = pneg %p48
        $region66: #{tpu_custom_call.1} parent=63 // pred_check_branch
          %400 = sbr.rel (%p398) target = $region68
        $region67: #{tpu_custom_call.1} parent=63 // pred_region
          %s401 = sand.u32 %s38, 1
          %s402 = scalar_lea.sflag [#allocation4], %s401
          %s403 = sand.u32 %s38, 1
          %s404 = smul.addr %s403, 32
          %s405 = scalar_lea.vmem [#allocation3], %s404
          %407 = vsyncadd %s402, 0
          %s408 = smul.addr %s28, 4
          %s409 = smul.addr %s408, 8
          %s410 = scalar_lea.hbm %s0, %s409
          %s411 = sshll.u32 %s410, 4
          %s412 = int_to_ptr.hbm [resolvable:$true] %s411
          %s413 = sshll.u32 %s405, 4
          %s414 = int_to_ptr.vmem [resolvable:$true] %s413
          %419 = dma.hbm_to_vmem [thread:$0]  %s412, 512, %s414, %s402, 256, 256, 16
        $region68: #{tpu_custom_call.1} parent=63 // pred_fallthru
          _
      $region64: #{tpu_custom_call.1} parent=5 // pred_fallthru
        _
      %p420 = scmp.le.s32.totalorder 1, %s28
      %p421 = scmp.lt.s32.totalorder %s28, 3
      %p422 = pnand %p420, %p421
      %p423 = pneg %p422
      // Predicated region
      $region69: #{tpu_custom_call.1} parent=5 // pred_check
        _
      $region70: #{tpu_custom_call.1} parent=5 // pred_check_branch
        %425 = sbr.rel (%p422) target = $region72
      $region71: #{tpu_custom_call.1} parent=5 // pred_region
        %s426 = ssub.s32 %s28, 1
        %s427 = sand.u32 %s41, 1
        %s428 = scalar_lea.sflag [#allocation4], %s427
        %s429 = sand.u32 %s41, 1
        %s430 = smul.addr %s429, 32
        %s431 = scalar_lea.vmem [#allocation3], %s430
        // Predicated region
        $region73: #{tpu_custom_call.1} parent=71 // pred_check
          %p432 = pneg %p54
        $region74: #{tpu_custom_call.1} parent=71 // pred_check_branch
          %434 = sbr.rel (%p432) target = $region76
        $region75: #{tpu_custom_call.1} parent=71 // pred_region
          %436 = dma.done %s428, 512
        $region76: #{tpu_custom_call.1} parent=71 // pred_fallthru
          _
        // Predicated region
        $region77: #{tpu_custom_call.1} parent=71 // pred_check
          %p437 = pneg %p117
        $region78: #{tpu_custom_call.1} parent=71 // pred_check_branch
          %439 = sbr.rel (%p437) target = $region80
        $region79: #{tpu_custom_call.1} parent=71 // pred_region
          %441 = dma.done [#allocation7], 6144
        $region80: #{tpu_custom_call.1} parent=71 // pred_fallthru
          _
        %s442 = sand.u32 %s41, 1
        %s443 = scalar_lea.sflag [#allocation4], %s442
        %s444 = sand.u32 %s41, 1
        %s445 = smul.addr %s444, 32
        %s446 = scalar_lea.vmem [#allocation3], %s445
        %p447 = pneg %p54
        %p448 = pneg %p51
        %p449 = pneg %p75
        %p450 = pneg %p72
        %p451 = pneg %p96
        %p452 = pneg %p93
        %p453 = pneg %p117
        %p454 = pneg %p114
        %p455 = pneg %p138
        %p456 = pneg %p135
        %p457 = pneg %p159
        %p458 = pneg %p156
        %p459 = pneg %p180
        %p460 = pneg %p177
        %p461 = pneg %p201
        %p462 = pneg %p198
        %p463 = pneg %p222
        %p464 = pneg %p219
        %p465 = pneg %p243
        %p466 = pneg %p240
        %p467 = pneg %p264
        %p468 = pneg %p261
        %p469 = pneg %p285
        %p470 = pneg %p282
        %p471 = pneg %p306
        %p472 = pneg %p303
        %p473 = pneg %p332
        %p474 = pneg %p329
        %s475 = sand.u32 %s319, 1
        %s476 = scalar_lea.sflag [#allocation5], %s475
        %s477 = sand.u32 %s319, 1
        %s478 = smul.addr %s477, 32
        %s479 = scalar_lea.vmem [#allocation8], %s478
        %v480 = vld [vmem:[%s431] sm:$0xff]
        %v481 = vld [vmem:[%s431 + $0x8] sm:$0xff]
        %v482 = vld [vmem:[%s431 + $0x10] sm:$0xff]
        %v483 = vld [vmem:[%s431 + $0x18] sm:$0xff]
        %v484 = vld [vmem:[%s1] sm:$0xff]
        %v485 = vld [vmem:[%s1 + $0x8] sm:$0xff]
        %v486 = vld [vmem:[%s1 + $0x10] sm:$0xff]
        %v487 = vld [vmem:[%s1 + $0x18] sm:$0xff]
        %v488 = vld [vmem:[%s1 + $0x20] sm:$0xff]
        %v489 = vld [vmem:[%s1 + $0x28] sm:$0xff]
        %v490 = vld [vmem:[%s1 + $0x30] sm:$0xff]
        %v491 = vld [vmem:[%s1 + $0x38] sm:$0xff]
        %v492 = vld [vmem:[%s1 + $0x40] sm:$0xff]
        %v493 = vld [vmem:[%s1 + $0x48] sm:$0xff]
        %v494 = vld [vmem:[%s1 + $0x50] sm:$0xff]
        %v495 = vld [vmem:[%s1 + $0x58] sm:$0xff]
        %v496 = vld [vmem:[%s1 + $0x60] sm:$0xff]
        %v497 = vld [vmem:[%s1 + $0x68] sm:$0xff]
        %v498 = vld [vmem:[%s1 + $0x70] sm:$0xff]
        %v499 = vld [vmem:[%s1 + $0x78] sm:$0xff]
        %v500 = vld [vmem:[%s1 + $0x80] sm:$0xff]
        %v501 = vld [vmem:[%s1 + $0x88] sm:$0xff]
        %v502 = vld [vmem:[%s1 + $0x90] sm:$0xff]
        %v503 = vld [vmem:[%s1 + $0x98] sm:$0xff]
        %v504 = vld [vmem:[%s1 + $0xa0] sm:$0xff]
        %v505 = vld [vmem:[%s1 + $0xa8] sm:$0xff]
        %v506 = vld [vmem:[%s1 + $0xb0] sm:$0xff]
        %v507 = vld [vmem:[%s1 + $0xb8] sm:$0xff]
        %v508 = vld [vmem:[%s1 + $0xc0] sm:$0xff]
        %v509 = vld [vmem:[%s1 + $0xc8] sm:$0xff]
        %v510 = vld [vmem:[%s1 + $0xd0] sm:$0xff]
        %v511 = vld [vmem:[%s1 + $0xd8] sm:$0xff]
        %v512 = vld [vmem:[%s1 + $0xe0] sm:$0xff]
        %v513 = vld [vmem:[%s1 + $0xe8] sm:$0xff]
        %v514 = vld [vmem:[%s1 + $0xf0] sm:$0xff]
        %v515 = vld [vmem:[%s1 + $0xf8] sm:$0xff]
        %v516 = vld [vmem:[%s2] sm:$0x1]
        %v518 = vperm.slane %v516, 0
        %520 = vmatpush.msra.mxu0 %v499
        %521 = vmatpush.msra.mxu0 %v498
        %522 = vmatpush.msra.mxu0 %v497
        %523 = vmatpush.msra.mxu0 %v496
        %524 = vmatpush.msra.mxu0 %v495
        %525 = vmatpush.msra.mxu0 %v494
        %526 = vmatpush.msra.mxu0 %v493
        %527 = vmatpush.msra.mxu0 %v492
        %528 = vmatpush.msra.mxu0 %v491
        %529 = vmatpush.msra.mxu0 %v490
        %530 = vmatpush.msra.mxu0 %v489
        %531 = vmatpush.msra.mxu0 %v488
        %532 = vmatpush.msra.mxu0 %v487
        %533 = vmatpush.msra.mxu0 %v486
        %534 = vmatpush.msra.mxu0 %v485
        %535 = vmatpush.msra.mxu0 %v484
        %536 = vmatmul.f32.gmra.mxu0 %v480
        %v537 = vpop.f32.mrf.mxu0
        %v538 = vadd.f32 %v518, %v537
        %539 = vmatmul.f32.gmra.mxu0 %v482
        %v540 = vpop.f32.mrf.mxu0
        %v541 = vadd.f32 %v518, %v540
        %542 = vdwg.mxu0
        %543 = vmatpush.msra.mxu0 %v515
        %544 = vmatpush.msra.mxu0 %v514
        %545 = vmatpush.msra.mxu0 %v513
        %546 = vmatpush.msra.mxu0 %v512
        %547 = vmatpush.msra.mxu0 %v511
        %548 = vmatpush.msra.mxu0 %v510
        %549 = vmatpush.msra.mxu0 %v509
        %550 = vmatpush.msra.mxu0 %v508
        %551 = vmatpush.msra.mxu0 %v507
        %552 = vmatpush.msra.mxu0 %v506
        %553 = vmatpush.msra.mxu0 %v505
        %554 = vmatpush.msra.mxu0 %v504
        %555 = vmatpush.msra.mxu0 %v503
        %556 = vmatpush.msra.mxu0 %v502
        %557 = vmatpush.msra.mxu0 %v501
        %558 = vmatpush.msra.mxu0 %v500
        %559 = vmatmul.f32.gmra.mxu0 %v481
        %v560 = vpop.f32.mrf.mxu0
        %v561 = vadd.f32 %v538, %v560
        %562 = vmatmul.f32.gmra.mxu0 %v483
        %v563 = vpop.f32.mrf.mxu0
        %v564 = vadd.f32 %v541, %v563
        %565 = vdwg.mxu0
        %vm568 = vcmask 1040384
        %v569 = vrot.slane %v561, 7
        %v570 = vrot.slane %v564, 7
        %v571 = vsel %vm568, %v569, %v570
        %v574 = vsel %vm568, 0.0, %v569
        %vm575 = vcmask 1046528
        %v576 = vrot.slane %v561, 1
        %v577 = vrot.slane %v564, 1
        %v578 = vsel %vm575, %v576, %v577
        %v581 = vsel %vm575, %v577, 0.0
        %v582 = vld [vmem:[#allocation6] sm:$0xff]
        %v583 = vld [vmem:[#allocation6 + $0x8] sm:$0xff]
        %v584 = vld [vmem:[#allocation6 + $0x10] sm:$0xff]
        %v585 = vld [vmem:[#allocation6 + $0x18] sm:$0xff]
        %v586 = vld [vmem:[#allocation6 + $0x20] sm:$0xff]
        %v587 = vld [vmem:[#allocation6 + $0x28] sm:$0xff]
        %v588 = vld [vmem:[#allocation6 + $0x30] sm:$0xff]
        %v589 = vld [vmem:[#allocation6 + $0x38] sm:$0xff]
        %v590 = vld [vmem:[#allocation6 + $0x40] sm:$0xff]
        %v591 = vld [vmem:[#allocation6 + $0x48] sm:$0xff]
        %v592 = vld [vmem:[#allocation6 + $0x50] sm:$0xff]
        %v593 = vld [vmem:[#allocation6 + $0x58] sm:$0xff]
        %v594 = vld [vmem:[#allocation6 + $0x60] sm:$0xff]
        %v595 = vld [vmem:[#allocation6 + $0x68] sm:$0xff]
        %v596 = vld [vmem:[#allocation6 + $0x70] sm:$0xff]
        %v597 = vld [vmem:[#allocation6 + $0x78] sm:$0xff]
        %s598 = scalar_lea.vmem [#allocation6], 128
        %v599 = vld [vmem:[%s598] sm:$0xff]
        %v600 = vld [vmem:[%s598 + $0x8] sm:$0xff]
        %v601 = vld [vmem:[%s598 + $0x10] sm:$0xff]
        %v602 = vld [vmem:[%s598 + $0x18] sm:$0xff]
        %v603 = vld [vmem:[%s598 + $0x20] sm:$0xff]
        %v604 = vld [vmem:[%s598 + $0x28] sm:$0xff]
        %v605 = vld [vmem:[%s598 + $0x30] sm:$0xff]
        %v606 = vld [vmem:[%s598 + $0x38] sm:$0xff]
        %v607 = vld [vmem:[%s598 + $0x40] sm:$0xff]
        %v608 = vld [vmem:[%s598 + $0x48] sm:$0xff]
        %v609 = vld [vmem:[%s598 + $0x50] sm:$0xff]
        %v610 = vld [vmem:[%s598 + $0x58] sm:$0xff]
        %v611 = vld [vmem:[%s598 + $0x60] sm:$0xff]
        %v612 = vld [vmem:[%s598 + $0x68] sm:$0xff]
        %v613 = vld [vmem:[%s598 + $0x70] sm:$0xff]
        %v614 = vld [vmem:[%s598 + $0x78] sm:$0xff]
        %615 = vmatpush.msra.mxu0 %v614
        %616 = vmatpush.msra.mxu0 %v613
        %617 = vmatpush.msra.mxu0 %v612
        %618 = vmatpush.msra.mxu0 %v611
        %619 = vmatpush.msra.mxu0 %v610
        %620 = vmatpush.msra.mxu0 %v609
        %621 = vmatpush.msra.mxu0 %v608
        %622 = vmatpush.msra.mxu0 %v607
        %623 = vmatpush.msra.mxu0 %v606
        %624 = vmatpush.msra.mxu0 %v605
        %625 = vmatpush.msra.mxu0 %v604
        %626 = vmatpush.msra.mxu0 %v603
        %627 = vmatpush.msra.mxu0 %v602
        %628 = vmatpush.msra.mxu0 %v601
        %629 = vmatpush.msra.mxu0 %v600
        %630 = vmatpush.msra.mxu0 %v599
        %631 = vmatmul.f32.gmra.mxu0 %v561
        %v632 = vpop.f32.mrf.mxu0
        %v633 = vadd.f32 0.0, %v632
        %634 = vmatmul.f32.gmra.mxu0 %v564
        %v635 = vpop.f32.mrf.mxu0
        %v636 = vadd.f32 0.0, %v635
        %637 = vdwg.mxu0
        %638 = vmatpush.msra.mxu0 %v597
        %639 = vmatpush.msra.mxu0 %v596
        %640 = vmatpush.msra.mxu0 %v595
        %641 = vmatpush.msra.mxu0 %v594
        %642 = vmatpush.msra.mxu0 %v593
        %643 = vmatpush.msra.mxu0 %v592
        %644 = vmatpush.msra.mxu0 %v591
        %645 = vmatpush.msra.mxu0 %v590
        %646 = vmatpush.msra.mxu0 %v589
        %647 = vmatpush.msra.mxu0 %v588
        %648 = vmatpush.msra.mxu0 %v587
        %649 = vmatpush.msra.mxu0 %v586
        %650 = vmatpush.msra.mxu0 %v585
        %651 = vmatpush.msra.mxu0 %v584
        %652 = vmatpush.msra.mxu0 %v583
        %653 = vmatpush.msra.mxu0 %v582
        %654 = vmatmul.f32.gmra.mxu0 %v574
        %v655 = vpop.f32.mrf.mxu0
        %v656 = vadd.f32 %v633, %v655
        %657 = vmatmul.f32.gmra.mxu0 %v571
        %v658 = vpop.f32.mrf.mxu0
        %v659 = vadd.f32 %v636, %v658
        %660 = vdwg.mxu0
        %s661 = scalar_lea.vmem [#allocation6], 256
        %v662 = vld [vmem:[%s661] sm:$0xff]
        %v663 = vld [vmem:[%s661 + $0x8] sm:$0xff]
        %v664 = vld [vmem:[%s661 + $0x10] sm:$0xff]
        %v665 = vld [vmem:[%s661 + $0x18] sm:$0xff]
        %v666 = vld [vmem:[%s661 + $0x20] sm:$0xff]
        %v667 = vld [vmem:[%s661 + $0x28] sm:$0xff]
        %v668 = vld [vmem:[%s661 + $0x30] sm:$0xff]
        %v669 = vld [vmem:[%s661 + $0x38] sm:$0xff]
        %v670 = vld [vmem:[%s661 + $0x40] sm:$0xff]
        %v671 = vld [vmem:[%s661 + $0x48] sm:$0xff]
        %v672 = vld [vmem:[%s661 + $0x50] sm:$0xff]
        %v673 = vld [vmem:[%s661 + $0x58] sm:$0xff]
        %v674 = vld [vmem:[%s661 + $0x60] sm:$0xff]
        %v675 = vld [vmem:[%s661 + $0x68] sm:$0xff]
        %v676 = vld [vmem:[%s661 + $0x70] sm:$0xff]
        %v677 = vld [vmem:[%s661 + $0x78] sm:$0xff]
        %678 = vmatpush.msra.mxu0 %v677
        %679 = vmatpush.msra.mxu0 %v676
        %680 = vmatpush.msra.mxu0 %v675
        %681 = vmatpush.msra.mxu0 %v674
        %682 = vmatpush.msra.mxu0 %v673
        %683 = vmatpush.msra.mxu0 %v672
        %684 = vmatpush.msra.mxu0 %v671
        %685 = vmatpush.msra.mxu0 %v670
        %686 = vmatpush.msra.mxu0 %v669
        %687 = vmatpush.msra.mxu0 %v668
        %688 = vmatpush.msra.mxu0 %v667
        %689 = vmatpush.msra.mxu0 %v666
        %690 = vmatpush.msra.mxu0 %v665
        %691 = vmatpush.msra.mxu0 %v664
        %692 = vmatpush.msra.mxu0 %v663
        %693 = vmatpush.msra.mxu0 %v662
        %694 = vmatmul.f32.gmra.mxu0 %v578
        %v695 = vpop.f32.mrf.mxu0
        %v696 = vadd.f32 0.0, %v695
        %697 = vmatmul.f32.gmra.mxu0 %v581
        %v698 = vpop.f32.mrf.mxu0
        %v699 = vadd.f32 0.0, %v698
        %700 = vdwg.mxu0
        %v701 = vadd.f32 %v656, %v696
        %v702 = vadd.f32 %v659, %v699
        %v703 = vld [vmem:[%s4] sm:$0x1]
        %v705 = vperm.slane %v703, 0
        %v707 = vadd.f32 %v701, %v705
        %v708 = vadd.f32 %v702, %v705
        %v709 = vld [vmem:[%s5] sm:$0xff]
        %v710 = vld [vmem:[%s5 + $0x8] sm:$0xff]
        %v711 = vld [vmem:[%s5 + $0x10] sm:$0xff]
        %v712 = vld [vmem:[%s5 + $0x18] sm:$0xff]
        %v713 = vld [vmem:[%s5 + $0x20] sm:$0xff]
        %v714 = vld [vmem:[%s5 + $0x28] sm:$0xff]
        %v715 = vld [vmem:[%s5 + $0x30] sm:$0xff]
        %v716 = vld [vmem:[%s5 + $0x38] sm:$0xff]
        %v717 = vld [vmem:[%s5 + $0x40] sm:$0xff]
        %v718 = vld [vmem:[%s5 + $0x48] sm:$0xff]
        %v719 = vld [vmem:[%s5 + $0x50] sm:$0xff]
        %v720 = vld [vmem:[%s5 + $0x58] sm:$0xff]
        %v721 = vld [vmem:[%s5 + $0x60] sm:$0xff]
        %v722 = vld [vmem:[%s5 + $0x68] sm:$0xff]
        %v723 = vld [vmem:[%s5 + $0x70] sm:$0xff]
        %v724 = vld [vmem:[%s5 + $0x78] sm:$0xff]
        %v725 = vld [vmem:[%s6] sm:$0x1]
        %v727 = vperm.slane %v725, 0
        %729 = vmatpush.msra.mxu0 %v724
        %730 = vmatpush.msra.mxu0 %v723
        %731 = vmatpush.msra.mxu0 %v722
        %732 = vmatpush.msra.mxu0 %v721
        %733 = vmatpush.msra.mxu0 %v720
        %734 = vmatpush.msra.mxu0 %v719
        %735 = vmatpush.msra.mxu0 %v718
        %736 = vmatpush.msra.mxu0 %v717
        %737 = vmatpush.msra.mxu0 %v716
        %738 = vmatpush.msra.mxu0 %v715
        %739 = vmatpush.msra.mxu0 %v714
        %740 = vmatpush.msra.mxu0 %v713
        %741 = vmatpush.msra.mxu0 %v712
        %742 = vmatpush.msra.mxu0 %v711
        %743 = vmatpush.msra.mxu0 %v710
        %744 = vmatpush.msra.mxu0 %v709
        %745 = vmatmul.f32.gmra.mxu0 %v707
        %v746 = vpop.f32.mrf.mxu0
        %v747 = vadd.f32 %v727, %v746
        %748 = vmatmul.f32.gmra.mxu0 %v708
        %v749 = vpop.f32.mrf.mxu0
        %v750 = vadd.f32 %v727, %v749
        %751 = vdwg.mxu0
        %v752 = vmax.f32 %v747, 0.0
        %v753 = vmax.f32 %v750, 0.0
        %v754 = vld [vmem:[%s7] sm:$0xff]
        %v755 = vld [vmem:[%s7 + $0x8] sm:$0xff]
        %v756 = vld [vmem:[%s8] sm:$0x1]
        %v758 = vperm.slane %v756, 0
        %vm760 = vcmask 130048
        %v762 = vsel %vm760, %v752, 0
        %v765 = vsel %vm760, %v753, 0
        %767 = vmatpush.msra.mxu0 0.0
        %768 = vmatpush.msra.mxu0 0.0
        %769 = vmatpush.msra.mxu0 0.0
        %770 = vmatpush.msra.mxu0 0.0
        %771 = vmatpush.msra.mxu0 0.0
        %772 = vmatpush.msra.mxu0 0.0
        %773 = vmatpush.msra.mxu0 0.0
        %774 = vmatpush.msra.mxu0 0.0
        %775 = vmatpush.msra.mxu0 0.0
        %776 = vmatpush.msra.mxu0 0.0
        %777 = vmatpush.msra.mxu0 0.0
        %778 = vmatpush.msra.mxu0 0.0
        %779 = vmatpush.msra.mxu0 0.0
        %780 = vmatpush.msra.mxu0 0.0
        %781 = vmatpush.msra.mxu0 %v755
        %782 = vmatpush.msra.mxu0 %v754
        %783 = vmatmul.f32.gmra.mxu0 %v762
        %v784 = vpop.f32.mrf.mxu0
        %v785 = vadd.f32 %v758, %v784
        %786 = vmatmul.f32.gmra.mxu0 %v765
        %v787 = vpop.f32.mrf.mxu0
        %v788 = vadd.f32 %v758, %v787
        %789 = vdwg.mxu0
        %v790 = vxor.u32 %v785, 2147483648
        %v791 = vxor.u32 %v788, 2147483648
        %v792 = vmul.f32 %v790, 1.442695
        %v793 = vpow.pop %v792
        %v794 = vmul.f32 %v791, 1.442695
        %v795 = vpow.pop %v794
        %v796 = vadd.f32 %v793, 1.0
        %v797 = vadd.f32 %v795, 1.0
        %v798 = vrcp.pop %v796
        %v799 = vmul.f32 %v796, %v798
        %v800 = vsub.f32 1.0, %v799
        %v801 = vmul.f32 %v798, %v800
        %v802 = vadd.f32 %v798, %v801
        %vm803 = vweird.f32 %v796
        %vm804 = vweird.f32 %v798
        %vm805 = vmor %vm803, %vm804
        %v806 = vsel %vm805, %v798, %v802
        %v807 = vand.u32 2147483647, %v796
        %vm808 = vcmp.eq.f32.partialorder %v807, 8.507059e+37
        %v809 = vand.u32 %v796, 2147483648
        %v810 = vor.u32 1.1754944e-38, %v809
        %v811 = vsel %vm808, %v810, %v806
        %v812 = vmul.f32 1.0, %v811
        %v813 = vrcp.pop %v797
        %v814 = vmul.f32 %v797, %v813
        %v815 = vsub.f32 1.0, %v814
        %v816 = vmul.f32 %v813, %v815
        %v817 = vadd.f32 %v813, %v816
        %vm818 = vweird.f32 %v797
        %vm819 = vweird.f32 %v813
        %vm820 = vmor %vm818, %vm819
        %v821 = vsel %vm820, %v813, %v817
        %v822 = vand.u32 2147483647, %v797
        %vm823 = vcmp.eq.f32.partialorder %v822, 8.507059e+37
        %v824 = vand.u32 %v797, 2147483648
        %v825 = vor.u32 1.1754944e-38, %v824
        %v826 = vsel %vm823, %v825, %v821
        %v827 = vmul.f32 1.0, %v826
        %v828 = vmul.f32 %v707, %v812
        %v829 = vmul.f32 %v708, %v827
        %v830 = vadd.f32 %v828, %v829
        %v831 = vrot.slane %v830, 4
        %v832 = vadd.f32 %v830, %v831
        %v833 = vrot.slane %v832, 2
        %v834 = vadd.f32 %v832, %v833
        %v835 = vrot.slane %v834, 1
        %v836 = vadd.f32 %v834, %v835
        %v837 = vrcp.pop 16.0
        %v838 = vmul.f32 16.0, %v837
        %v839 = vsub.f32 1.0, %v838
        %v840 = vmul.f32 %v837, %v839
        %v841 = vadd.f32 %v837, %v840
        %vm842 = vweird.f32 %v837
        %v843 = vsel %vm842, %v837, %v841
        %v844 = vmul.f32 %v836, %v843
        %v845 = vld [vmem:[%s9] sm:$0xff]
        %v846 = vld [vmem:[%s9 + $0x8] sm:$0xff]
        %v847 = vld [vmem:[%s9 + $0x10] sm:$0xff]
        %v848 = vld [vmem:[%s9 + $0x18] sm:$0xff]
        %v849 = vld [vmem:[%s9 + $0x20] sm:$0xff]
        %v850 = vld [vmem:[%s9 + $0x28] sm:$0xff]
        %v851 = vld [vmem:[%s9 + $0x30] sm:$0xff]
        %v852 = vld [vmem:[%s9 + $0x38] sm:$0xff]
        %v853 = vld [vmem:[%s9 + $0x40] sm:$0xff]
        %v854 = vld [vmem:[%s9 + $0x48] sm:$0xff]
        %v855 = vld [vmem:[%s9 + $0x50] sm:$0xff]
        %v856 = vld [vmem:[%s9 + $0x58] sm:$0xff]
        %v857 = vld [vmem:[%s9 + $0x60] sm:$0xff]
        %v858 = vld [vmem:[%s9 + $0x68] sm:$0xff]
        %v859 = vld [vmem:[%s9 + $0x70] sm:$0xff]
        %v860 = vld [vmem:[%s9 + $0x78] sm:$0xff]
        %v861 = vld [vmem:[#allocation2] sm:$0x1]
        %862 = vmatpush.msra.mxu0 %v860
        %863 = vmatpush.msra.mxu0 %v859
        %864 = vmatpush.msra.mxu0 %v858
        %865 = vmatpush.msra.mxu0 %v857
        %866 = vmatpush.msra.mxu0 %v856
        %867 = vmatpush.msra.mxu0 %v855
        %868 = vmatpush.msra.mxu0 %v854
        %869 = vmatpush.msra.mxu0 %v853
        %870 = vmatpush.msra.mxu0 %v852
        %871 = vmatpush.msra.mxu0 %v851
        %872 = vmatpush.msra.mxu0 %v850
        %873 = vmatpush.msra.mxu0 %v849
        %874 = vmatpush.msra.mxu0 %v848
        %875 = vmatpush.msra.mxu0 %v847
        %876 = vmatpush.msra.mxu0 %v846
        %877 = vmatpush.msra.mxu0 %v845
        %878 = vmatmul.f32.gmra.mxu0 %v844
        %v879 = vpop.f32.mrf.mxu0
        %v880 = vadd.f32 %v861, %v879
        %881 = vdwg.mxu0
        %v882 = vmax.f32 %v880, 0.0
        %v883 = vld [vmem:[%s11] sm:$0x1]
        %v884 = vld [vmem:[%s12] sm:$0x1]
        %vm885 = vcmask 7168
        %v887 = vsel %vm885, %v882, 0
        %v890 = vsel %vm568, %v883, 0
        %892 = vmatpush.msra.mxu0 0.0
        %893 = vmatpush.msra.mxu0 0.0
        %894 = vmatpush.msra.mxu0 0.0
        %895 = vmatpush.msra.mxu0 0.0
        %896 = vmatpush.msra.mxu0 0.0
        %897 = vmatpush.msra.mxu0 0.0
        %898 = vmatpush.msra.mxu0 0.0
        %899 = vmatpush.msra.mxu0 0.0
        %900 = vmatpush.msra.mxu0 0.0
        %901 = vmatpush.msra.mxu0 0.0
        %902 = vmatpush.msra.mxu0 0.0
        %903 = vmatpush.msra.mxu0 0.0
        %904 = vmatpush.msra.mxu0 0.0
        %905 = vmatpush.msra.mxu0 0.0
        %906 = vmatpush.msra.mxu0 0.0
        %907 = vmatpush.msra.mxu0 %v890
        %908 = vmatmul.f32.gmra.mxu0 %v887
        %v909 = vpop.f32.mrf.mxu0
        %v910 = vadd.f32 %v884, %v909
        %911 = vdwg.mxu0
        %v912 = vxor.u32 %v910, 2147483648
        %v913 = vmul.f32 %v912, 1.442695
        %v914 = vpow.pop %v913
        %v915 = vadd.f32 %v914, 1.0
        %v916 = vrcp.pop %v915
        %v917 = vmul.f32 %v915, %v916
        %v918 = vsub.f32 1.0, %v917
        %v919 = vmul.f32 %v916, %v918
        %v920 = vadd.f32 %v916, %v919
        %vm921 = vweird.f32 %v915
        %vm922 = vweird.f32 %v916
        %vm923 = vmor %vm921, %vm922
        %v924 = vsel %vm923, %v916, %v920
        %v925 = vand.u32 2147483647, %v915
        %vm926 = vcmp.eq.f32.partialorder %v925, 8.507059e+37
        %v927 = vand.u32 %v915, 2147483648
        %v928 = vor.u32 1.1754944e-38, %v927
        %v929 = vsel %vm926, %v928, %v924
        %v930 = vmul.f32 1.0, %v929
        %v931 = vperm.slane %v930, 0
        %v932 = vmul.f32 %v828, %v931
        %v933 = vmul.f32 %v829, %v931
        %v934 = vmax.f32 %v932, 0.0
        %v935 = vmax.f32 %v933, 0.0
        %936 = vst [vmem:[%s479] sm:$0xff] %v934
        %937 = vst [vmem:[%s479 + $0x10] sm:$0xff] %v935
        %v938 = vmin.f32 %v932, 0.0
        %v939 = vmin.f32 %v933, 0.0
        %940 = vst [vmem:[%s479 + $0x8] sm:$0xff] %v938
        %941 = vst [vmem:[%s479 + $0x18] sm:$0xff] %v939
        %s942 = sand.u32 %s319, 1
        %s943 = scalar_lea.sflag [#allocation5], %s942
        %s944 = sand.u32 %s319, 1
        %s945 = smul.addr %s944, 32
        %s946 = scalar_lea.vmem [#allocation8], %s945
        // Predicated region
        $region81: #{tpu_custom_call.1} parent=71 // pred_check
          %p947 = pneg %p329
        $region82: #{tpu_custom_call.1} parent=71 // pred_check_branch
          %949 = sbr.rel (%p947) target = $region84
        $region83: #{tpu_custom_call.1} parent=71 // pred_region
          %951 = vsyncadd %s943, 0
          %s952 = smul.addr %s33, 4
          %s953 = smul.addr %s952, 8
          %s954 = scalar_lea.hbm %s13, %s953
          %s955 = sshll.u32 %s946, 4
          %s956 = int_to_ptr.vmem [resolvable:$true] %s955
          %s957 = sshll.u32 %s954, 4
          %s958 = int_to_ptr.hbm [resolvable:$true] %s957
          %963 = dma.vmem_to_hbm [thread:$0]  %s956, 512, %s958, %s943, 256, 256, 16
        $region84: #{tpu_custom_call.1} parent=71 // pred_fallthru
          _
      $region72: #{tpu_custom_call.1} parent=5 // pred_fallthru
        _
      %p964 = scmp.le.s32.totalorder 2, %s28
      // Predicated region
      $region85: #{tpu_custom_call.1} parent=5 // pred_check
        %p965 = pneg %p964
      $region86: #{tpu_custom_call.1} parent=5 // pred_check_branch
        %967 = sbr.rel (%p965) target = $region88
      $region87: #{tpu_custom_call.1} parent=5 // pred_region
        %s968 = ssub.s32 %s28, 2
        // Predicated region
        $region89: #{tpu_custom_call.1} parent=87 // pred_check
          %p969 = pneg %p335
        $region90: #{tpu_custom_call.1} parent=87 // pred_check_branch
          %971 = sbr.rel (%p969) target = $region92
        $region91: #{tpu_custom_call.1} parent=87 // pred_region
          %s972 = sand.u32 %s320, 1
          %s973 = scalar_lea.sflag [#allocation5], %s972
          %s974 = sand.u32 %s320, 1
          %s975 = smul.addr %s974, 32
          %s976 = scalar_lea.vmem [#allocation8], %s975
          %978 = dma.done %s973, 512
        $region92: #{tpu_custom_call.1} parent=87 // pred_fallthru
          _
      $region88: #{tpu_custom_call.1} parent=5 // pred_fallthru
        _
    $region6: #{tpu_custom_call.1} parent=1 // loop_footer
      %s32 = sadd.s32 1, %s28
    $region7: #{tpu_custom_call.1} parent=1 // loop_footer_branch
      %27 = sbr.rel target = $region3
    $region8: #{tpu_custom_call.1} parent=1 // loop_exit
      _
    %979 = vsyncpa [#allocation4], 1
    %s980 = scalar_lea.sflag [#allocation4], 1
    %981 = vsyncpa %s980, 1
    %982 = vsyncpa [#allocation7], 1
    %983 = vsyncpa [#allocation5], 1
    %s984 = scalar_lea.sflag [#allocation5], 1
    %985 = vsyncpa %s984, 1

</llo_original>
